<compile_context>
chip_gen: v7x
topology: tpu7x:2x2x1
jax: 0.10.0
libtpu: 0.0.40
codegen_flags: <defaults>
</compile_context>

<pallas_src>
import functools

import jax
import jax.numpy as jnp
from jax.experimental import pallas as pl
from jax.experimental.pallas import tpu as pltpu

LANE = 128


def _round_up(x: int, m: int) -> int:
    return (x + m - 1) // m * m


def _cdiv(a: int, b: int) -> int:
    return (a + b - 1) // b


def _vmem_budget_bytes() -> int:
    """~80% of physical per-core VMEM (v7x ~51 MiB, v5e/v6e ~102 MiB)."""
    cap = 128 * 1024 * 1024
    try:
        info = pltpu.get_tpu_info()
        cap = int(getattr(info, "vmem_capacity_bytes", cap) or cap)
    except Exception:
        pass
    return int(cap * 0.8)


def make_adversary_kernel(n_hidden: int, label_is_one: bool):
    """Kernel closure for a fixed (n_hidden, num_labels==1) configuration.

    Ref order (label_is_one):
        (n_real_smem, x, w0, b0, ..., w_{n_hidden-1}, b_{n_hidden-1}, wf, bf, out, psum)
    otherwise:
        (x, w0, b0, ..., wf, bf, out)
    Weights are bf16 (in, out); biases are f32 (1, out); x tile is bf16.
    """

    def kernel(*refs):
        if label_is_one:
            n_ref, x_ref = refs[0], refs[1]
            p = refs[2:-2]
            out_ref, psum_ref = refs[-2], refs[-1]
        else:
            x_ref = refs[0]
            p = refs[1:-1]
            out_ref = refs[-1]

        ws = [p[2 * i] for i in range(n_hidden + 1)]
        bs = [p[2 * i + 1] for i in range(n_hidden + 1)]

        def linear(z_f32, w_ref, b_ref):
            # bf16 MXU matmul, f32 accumulate, f32 bias add.
            return (
                jnp.dot(
                    z_f32.astype(jnp.bfloat16),
                    w_ref[...],
                    preferred_element_type=jnp.float32,
                )
                + b_ref[...]
            )

        x = x_ref[...].astype(jnp.float32)

        if n_hidden == 0:
            # adversary = [Linear(H, num_labels)] only.
            logits = linear(x, ws[0], bs[0])
        else:
            def seq0(z):
                # adversary[0]: Linear(H, H) + Dropout (identity in eval mode).
                return linear(z, ws[0], bs[0])

            res = x
            feats = seq0(x)                      # i = 0
            for li in range(1, n_hidden):        # i = 2, ..., 2*(n_hidden-1)
                feats = seq0(feats + res)        # adversary[0](features + res)
                res = feats                      # res_features = features
                feats = linear(feats, ws[li], bs[li])
            feats = seq0(feats + res)            # i = 2*n_hidden (pre-projection)
            logits = linear(feats, ws[n_hidden], bs[n_hidden])

        if label_is_one:
            ew = jnp.maximum(logits, 0.0)
            out_ref[...] = ew.astype(out_ref.dtype)
            # Per-tile partial column sums masked to the real rows so the wrapper's
            # global mean is an O(n_tiles) reduction (no padded-HBM re-read).
            tm = x_ref.shape[0]
            row0 = pl.program_id(0) * tm
            row_ids = jax.lax.broadcasted_iota(jnp.int32, ew.shape, 0) + row0
            mask = row_ids < n_ref[0]
            psum_ref[...] = jnp.sum(
                jnp.where(mask, ew, 0.0), axis=0, keepdims=True
            )
        else:
            out_ref[...] = logits.astype(out_ref.dtype)

    return kernel


def prepare_adversary_params(hidden_ws, hidden_bs, final_w, final_b):
    """One-time pad to lane/MXU alignment + bf16 cast of the weights (f32 biases).

    hidden_ws[i]: (H, H) pre-transposed (in, out); hidden_bs[i]: (1, H);
    final_w: (H, L); final_b: (1, L). Zero padding is mathematically exact.
    Hoisted out of the per-call path so no forward pass re-reads/re-writes weights.
    """
    H, L = final_w.shape
    H_pad = _round_up(H, LANE)
    L_pad = _round_up(L, LANE)

    ws, bs = [], []
    for w, b in zip(hidden_ws, hidden_bs):
        ws.append(
            jnp.pad(w.astype(jnp.float32), ((0, H_pad - H), (0, H_pad - H)))
            .astype(jnp.bfloat16)
        )
        bs.append(jnp.pad(b.astype(jnp.float32), ((0, 0), (0, H_pad - H))))
    wf = jnp.pad(
        final_w.astype(jnp.float32), ((0, H_pad - H), (0, L_pad - L))
    ).astype(jnp.bfloat16)
    bf = jnp.pad(final_b.astype(jnp.float32), ((0, 0), (0, L_pad - L)))
    return tuple(ws), tuple(bs), wf, bf


def adversary_forward(features, hidden_ws, hidden_bs, final_w, final_b, *,
                      num_labels, block_m=512):
    """features: (N, H) f32. hidden_ws/hidden_bs/final_w/final_b: outputs of
    prepare_adversary_params (already padded + bf16 weights / f32 biases).
    Returns (N, num_labels) f32 example weights (or raw logits for num_labels != 1)."""
    n_hidden = len(hidden_ws)
    N, H = features.shape
    H_pad = final_w.shape[0]
    L_pad = final_w.shape[1]
    assert H <= H_pad and num_labels <= L_pad

    # --- Generation-aware tile sizing --------------------------------------
    weight_bytes = sum(
        w.size * w.dtype.itemsize + b.size * b.dtype.itemsize
        for w, b in zip(hidden_ws, hidden_bs)
    )
    weight_bytes += final_w.size * final_w.dtype.itemsize
    weight_bytes += final_b.size * final_b.dtype.itemsize
    vmem_budget = _vmem_budget_bytes()
    # Per-row VMEM: bf16 x double-buffer + f32 out double-buffer + ~5 live f32 activations.
    per_row = 2 * H_pad * 2 + 2 * L_pad * 4 + 5 * H_pad * 4
    headroom = 4 * 1024 * 1024  # Mosaic internal scratch, psum buffers, misc.
    avail = vmem_budget - weight_bytes - headroom
    tm_cap = max(16, (avail // per_row) // 16 * 16) if avail > 0 else 16
    # TODO(synk): if weight_bytes alone exceeds the budget, switch to layer-tiled weights.
    block_m = max(16, min(block_m, tm_cap))

    # Balanced tiling: minimal row padding (instead of round_up(N, TM)).
    n_tiles = _cdiv(N, block_m)
    TM = _round_up(_cdiv(N, n_tiles), 16)
    N_pad = n_tiles * TM

    # Features travel as bf16 tiles (first use is a bf16 matmul; the residual add
    # precision changes negligibly).
    x = jnp.pad(features.astype(jnp.bfloat16), ((0, N_pad - N), (0, H_pad - H)))

    resident = pl.BlockSpec(memory_space=pltpu.MemorySpace.VMEM)  # single-buffered
    label_is_one = (num_labels == 1)

    args, in_specs = [], []
    if label_is_one:
        args.append(jnp.array([N], dtype=jnp.int32))                 # real row count
        in_specs.append(pl.BlockSpec(memory_space=pltpu.MemorySpace.SMEM))
    args.append(x)
    in_specs.append(pl.BlockSpec((TM, H_pad), lambda i: (i, 0)))
    for w, b in zip(hidden_ws, hidden_bs):
        args += [w, b]
        in_specs += [resident, resident]
    args += [final_w, final_b]
    in_specs += [resident, resident]

    # Advisory cost estimate for the XLA scheduler.
    flops = 2 * N_pad * H_pad * H_pad * (2 * n_hidden) + 2 * N_pad * H_pad * L_pad
    bytes_accessed = (
        N_pad * H_pad * 2            # features in (bf16)
        + weight_bytes               # resident weights/biases
        + N_pad * L_pad * 4          # output (f32)
        + n_tiles * L_pad * 4        # per-tile partials
    )
    cost = pl.CostEstimate(flops=flops, transcendentals=0,
                           bytes_accessed=bytes_accessed)

    kernel = make_adversary_kernel(n_hidden, label_is_one)

    if label_is_one:
        out_shape = (
            jax.ShapeDtypeStruct((N_pad, L_pad), jnp.float32),
            jax.ShapeDtypeStruct((n_tiles, L_pad), jnp.float32),
        )
        out_specs = (
            pl.BlockSpec((TM, L_pad), lambda i: (i, 0)),
            pl.BlockSpec((1, L_pad), lambda i: (i, 0)),
        )
    else:
        out_shape = jax.ShapeDtypeStruct((N_pad, L_pad), jnp.float32)
        out_specs = pl.BlockSpec((TM, L_pad), lambda i: (i, 0))

    result = pl.pallas_call(
        kernel,
        out_shape=out_shape,
        grid=(n_tiles,),
        in_specs=in_specs,
        out_specs=out_specs,
        compiler_params=pltpu.CompilerParams(
            dimension_semantics=("parallel",),
            vmem_limit_bytes=vmem_budget,
        ),
        cost_estimate=cost,
    )(*args)

    if label_is_one:
        ew_pad, partials = result
        # Global batch mean over the real N x 1 elements from the masked per-tile
        # partial sums (O(n_tiles) scalars; no padded intermediate re-read).
        mean_ew = jnp.sum(partials[:, 0]) / jnp.float32(N)
        denom = jnp.maximum(mean_ew, jnp.float32(1e-4))
        # Fused XLA elementwise on the real slice replaces the old normalize kernel.
        return 1.0 + ew_pad[:N, :num_labels] / denom

    # TODO(synk): num_labels >= 2 branches of compute_example_weights raise in the
    # PyTorch reference (sigmoid(dim=...) TypeError / out-of-range column); emit logits.
    return result[:N, :num_labels]


def adversary_forward_ref(features, hidden_ws, hidden_bs, final_w, final_b, num_labels):
    """Pure-jnp reference with bf16-emulated matmuls (matches the kernel's numerics)."""
    def lin(z, w, b):
        return jnp.dot(z.astype(jnp.bfloat16), w.astype(jnp.bfloat16),
                       preferred_element_type=jnp.float32) + b.astype(jnp.float32)

    n_hidden = len(hidden_ws)
    x = features.astype(jnp.bfloat16).astype(jnp.float32)
    if n_hidden == 0:
        logits = lin(x, final_w, final_b)
    else:
        def seq0(z):
            return lin(z, hidden_ws[0], hidden_bs[0])
        res = x
        feats = seq0(x)
        for li in range(1, n_hidden):
            feats = seq0(feats + res)
            res = feats
            feats = lin(feats, hidden_ws[li], hidden_bs[li])
        feats = seq0(feats + res)
        logits = lin(feats, final_w, final_b)

    if num_labels == 1:
        ew = jnp.maximum(logits, 0.0)
        mean_ew = jnp.mean(ew)
        return 1.0 + ew / jnp.maximum(mean_ew, jnp.float32(1e-4))
    return logits


def init_params(key, hidden_size, num_labels, n_hidden):
    """Deterministic init mimicking nn.Linear default U(-1/sqrt(fan_in), 1/sqrt(fan_in)).
    Weights are returned pre-transposed to (in, out)."""
    hidden_ws, hidden_bs = [], []
    bound_h = 1.0 / jnp.sqrt(jnp.float32(hidden_size))
    for _ in range(n_hidden):
        key, kw, kb = jax.random.split(key, 3)
        w = jax.random.uniform(
            kw, (hidden_size, hidden_size), jnp.float32, -bound_h, bound_h
        )
        b = jax.random.uniform(kb, (1, hidden_size), jnp.float32, -bound_h, bound_h)
        hidden_ws.append(w)
        hidden_bs.append(b)
    key, kw, kb = jax.random.split(key, 3)
    final_w = jax.random.uniform(
        kw, (hidden_size, num_labels), jnp.float32, -bound_h, bound_h
    )
    final_b = jax.random.uniform(kb, (1, num_labels), jnp.float32, -bound_h, bound_h)
    return hidden_ws, hidden_bs, final_w, final_b


if __name__ == "__main__":
    # Small shapes consistent with the module: features (batch, hidden_size).
    batch, hidden_size, num_labels, n_hidden = 8, 32, 1, 2

    key = jax.random.PRNGKey(0)
    key, kx = jax.random.split(key)
    features = jax.random.normal(kx, (batch, hidden_size), jnp.float32)

    hidden_ws, hidden_bs, final_w, final_b = init_params(
        key, hidden_size, num_labels, n_hidden
    )

    # One-time pad + bf16 cast, hoisted out of the per-call forward path.
    p_ws, p_bs, p_wf, p_bf = prepare_adversary_params(
        hidden_ws, hidden_bs, final_w, final_b
    )

    fwd = jax.jit(functools.partial(adversary_forward, num_labels=num_labels))
    out = fwd(features, p_ws, p_bs, p_wf, p_bf)
    jax.block_until_ready(out)

    ref = adversary_forward_ref(features, hidden_ws, hidden_bs, final_w, final_b,
                                num_labels)
    assert out.shape == (batch, num_labels), out.shape
    assert bool(jnp.all(jnp.isfinite(out))), "non-finite output"
    # num_labels == 1 branch: weights = 1 + relu(logits)/max(mean, 1e-4) >= 1
    assert bool(jnp.all(out >= 1.0 - 1e-6)), "weights should be >= 1"
    assert bool(jnp.allclose(out, ref, rtol=1e-3, atol=1e-3)), (
        float(jnp.max(jnp.abs(out - ref)))
    )

    # Second config: batch not a multiple of the tile size and multiple grid tiles
    # (exercises row masking of the partial sums and the balanced-TM path).
    batch2 = 35
    key, kx2 = jax.random.split(key)
    features2 = jax.random.normal(kx2, (batch2, hidden_size), jnp.float32)
    fwd2 = jax.jit(functools.partial(adversary_forward, num_labels=num_labels,
                                     block_m=16))
    out2 = fwd2(features2, p_ws, p_bs, p_wf, p_bf)
    jax.block_until_ready(out2)
    ref2 = adversary_forward_ref(features2, hidden_ws, hidden_bs, final_w, final_b,
                                 num_labels)
    assert out2.shape == (batch2, num_labels), out2.shape
    assert bool(jnp.all(out2 >= 1.0 - 1e-6)), "weights should be >= 1"
    assert bool(jnp.allclose(out2, ref2, rtol=1e-3, atol=1e-3)), (
        float(jnp.max(jnp.abs(out2 - ref2)))
    )

    print("KERNEL_OK")
</pallas_src>

<mosaic_0001>
module attributes {stable_mosaic.version = 11 : i64} {
  func.func @kernel(%arg0: i32, %arg1: memref<1xi32, #tpu.memory_space<smem>>, %arg2: memref<16x128xbf16, #tpu.memory_space<vmem>>, %arg3: memref<128x128xbf16, #tpu.memory_space<vmem>>, %arg4: memref<1x128xf32, #tpu.memory_space<vmem>>, %arg5: memref<128x128xbf16, #tpu.memory_space<vmem>>, %arg6: memref<1x128xf32, #tpu.memory_space<vmem>>, %arg7: memref<128x128xbf16, #tpu.memory_space<vmem>>, %arg8: memref<1x128xf32, #tpu.memory_space<vmem>>, %arg9: memref<16x128xf32, #tpu.memory_space<vmem>>, %arg10: memref<1x128xf32, #tpu.memory_space<vmem>>) attributes {dimension_semantics = [#tpu.dimension_semantics<parallel>], iteration_bounds = array<i64: 1>, scalar_prefetch = 0 : i64, scratch_operands = 0 : i64, tpu.core_type = #tpu.core_type<tc>, window_params = [{transform_indices = @transform_0, window_bounds = array<i64: 1>}, {transform_indices = @transform_1, window_bounds = array<i64: 16, 128>}, {pipeline_mode = #tpu.pipeline_mode<synchronous>, transform_indices = @transform_2, window_bounds = array<i64: 128, 128>}, {pipeline_mode = #tpu.pipeline_mode<synchronous>, transform_indices = @transform_3, window_bounds = array<i64: 1, 128>}, {pipeline_mode = #tpu.pipeline_mode<synchronous>, transform_indices = @transform_4, window_bounds = array<i64: 128, 128>}, {pipeline_mode = #tpu.pipeline_mode<synchronous>, transform_indices = @transform_5, window_bounds = array<i64: 1, 128>}, {pipeline_mode = #tpu.pipeline_mode<synchronous>, transform_indices = @transform_6, window_bounds = array<i64: 128, 128>}, {pipeline_mode = #tpu.pipeline_mode<synchronous>, transform_indices = @transform_7, window_bounds = array<i64: 1, 128>}, {transform_indices = @transform_8, window_bounds = array<i64: 16, 128>}, {transform_indices = @transform_9, window_bounds = array<i64: 1, 128>}]} {
    %c0 = arith.constant 0 : index
    %c0_0 = arith.constant 0 : index
    %0 = vector.load %arg2[%c0, %c0_0] : memref<16x128xbf16, #tpu.memory_space<vmem>>, vector<16x128xbf16>
    %1 = arith.extf %0 : vector<16x128xbf16> to vector<16x128xf32>
    %2 = arith.truncf %1 : vector<16x128xf32> to vector<16x128xbf16>
    %c0_1 = arith.constant 0 : index
    %c0_2 = arith.constant 0 : index
    %3 = vector.load %arg3[%c0_1, %c0_2] : memref<128x128xbf16, #tpu.memory_space<vmem>>, vector<128x128xbf16>
    %cst = arith.constant dense<0.000000e+00> : vector<16x128xf32>
    %4 = tpu.matmul %2, %3, %cst {dimension_numbers = #tpu.dot_dimension_numbers<[1], [0], [0], [1], [0, 0, 1, 1], [], []>} : vector<16x128xbf16>, vector<128x128xbf16>, vector<16x128xf32> -> vector<16x128xf32>
    %c0_3 = arith.constant 0 : index
    %c0_4 = arith.constant 0 : index
    %5 = vector.load %arg4[%c0_3, %c0_4] : memref<1x128xf32, #tpu.memory_space<vmem>>, vector<1x128xf32>
    %6 = vector.broadcast %5 : vector<1x128xf32> to vector<16x128xf32>
    %7 = arith.addf %4, %6 : vector<16x128xf32>
    %8 = arith.addf %7, %1 : vector<16x128xf32>
    %9 = arith.truncf %8 : vector<16x128xf32> to vector<16x128xbf16>
    %c0_5 = arith.constant 0 : index
    %c0_6 = arith.constant 0 : index
    %10 = vector.load %arg3[%c0_5, %c0_6] : memref<128x128xbf16, #tpu.memory_space<vmem>>, vector<128x128xbf16>
    %cst_7 = arith.constant dense<0.000000e+00> : vector<16x128xf32>
    %11 = tpu.matmul %9, %10, %cst_7 {dimension_numbers = #tpu.dot_dimension_numbers<[1], [0], [0], [1], [0, 0, 1, 1], [], []>} : vector<16x128xbf16>, vector<128x128xbf16>, vector<16x128xf32> -> vector<16x128xf32>
    %c0_8 = arith.constant 0 : index
    %c0_9 = arith.constant 0 : index
    %12 = vector.load %arg4[%c0_8, %c0_9] : memref<1x128xf32, #tpu.memory_space<vmem>>, vector<1x128xf32>
    %13 = vector.broadcast %12 : vector<1x128xf32> to vector<16x128xf32>
    %14 = arith.addf %11, %13 : vector<16x128xf32>
    %15 = arith.truncf %14 : vector<16x128xf32> to vector<16x128xbf16>
    %c0_10 = arith.constant 0 : index
    %c0_11 = arith.constant 0 : index
    %16 = vector.load %arg5[%c0_10, %c0_11] : memref<128x128xbf16, #tpu.memory_space<vmem>>, vector<128x128xbf16>
    %cst_12 = arith.constant dense<0.000000e+00> : vector<16x128xf32>
    %17 = tpu.matmul %15, %16, %cst_12 {dimension_numbers = #tpu.dot_dimension_numbers<[1], [0], [0], [1], [0, 0, 1, 1], [], []>} : vector<16x128xbf16>, vector<128x128xbf16>, vector<16x128xf32> -> vector<16x128xf32>
    %c0_13 = arith.constant 0 : index
    %c0_14 = arith.constant 0 : index
    %18 = vector.load %arg6[%c0_13, %c0_14] : memref<1x128xf32, #tpu.memory_space<vmem>>, vector<1x128xf32>
    %19 = vector.broadcast %18 : vector<1x128xf32> to vector<16x128xf32>
    %20 = arith.addf %17, %19 : vector<16x128xf32>
    %21 = arith.addf %20, %14 : vector<16x128xf32>
    %22 = arith.truncf %21 : vector<16x128xf32> to vector<16x128xbf16>
    %c0_15 = arith.constant 0 : index
    %c0_16 = arith.constant 0 : index
    %23 = vector.load %arg3[%c0_15, %c0_16] : memref<128x128xbf16, #tpu.memory_space<vmem>>, vector<128x128xbf16>
    %cst_17 = arith.constant dense<0.000000e+00> : vector<16x128xf32>
    %24 = tpu.matmul %22, %23, %cst_17 {dimension_numbers = #tpu.dot_dimension_numbers<[1], [0], [0], [1], [0, 0, 1, 1], [], []>} : vector<16x128xbf16>, vector<128x128xbf16>, vector<16x128xf32> -> vector<16x128xf32>
    %c0_18 = arith.constant 0 : index
    %c0_19 = arith.constant 0 : index
    %25 = vector.load %arg4[%c0_18, %c0_19] : memref<1x128xf32, #tpu.memory_space<vmem>>, vector<1x128xf32>
    %26 = vector.broadcast %25 : vector<1x128xf32> to vector<16x128xf32>
    %27 = arith.addf %24, %26 : vector<16x128xf32>
    %28 = arith.truncf %27 : vector<16x128xf32> to vector<16x128xbf16>
    %c0_20 = arith.constant 0 : index
    %c0_21 = arith.constant 0 : index
    %29 = vector.load %arg7[%c0_20, %c0_21] : memref<128x128xbf16, #tpu.memory_space<vmem>>, vector<128x128xbf16>
    %cst_22 = arith.constant dense<0.000000e+00> : vector<16x128xf32>
    %30 = tpu.matmul %28, %29, %cst_22 {dimension_numbers = #tpu.dot_dimension_numbers<[1], [0], [0], [1], [0, 0, 1, 1], [], []>} : vector<16x128xbf16>, vector<128x128xbf16>, vector<16x128xf32> -> vector<16x128xf32>
    %c0_23 = arith.constant 0 : index
    %c0_24 = arith.constant 0 : index
    %31 = vector.load %arg8[%c0_23, %c0_24] : memref<1x128xf32, #tpu.memory_space<vmem>>, vector<1x128xf32>
    %32 = vector.broadcast %31 : vector<1x128xf32> to vector<16x128xf32>
    %33 = arith.addf %30, %32 : vector<16x128xf32>
    %cst_25 = arith.constant 0.000000e+00 : f32
    %34 = vector.broadcast %cst_25 : f32 to vector<16x128xf32>
    %35 = arith.maximumf %33, %34 : vector<16x128xf32>
    %c0_26 = arith.constant 0 : index
    %c0_27 = arith.constant 0 : index
    %36 = vector.load %arg9[%c0_26, %c0_27] : memref<16x128xf32, #tpu.memory_space<vmem>>, vector<16x128xf32>
    tpu.vector_store %arg9[%c0_26, %c0_27], %35 {strides = array<i32>} : memref<16x128xf32, #tpu.memory_space<vmem>>, vector<16x128xf32>,
    %c16_i32 = arith.constant 16 : i32
    %37 = arith.muli %arg0, %c16_i32 : i32
    %38 = tpu.iota {dimensions = array<i32: 0>} : vector<16x128xi32>
    %39 = vector.broadcast %37 : i32 to vector<16x128xi32>
    %40 = arith.addi %38, %39 : vector<16x128xi32>
    %c0_28 = arith.constant 0 : index
    %41 = memref.load %arg1[%c0_28] : memref<1xi32, #tpu.memory_space<smem>>
    %42 = vector.broadcast %41 : i32 to vector<16x128xi32>
    %43 = arith.cmpi slt, %40, %42 : vector<16x128xi32>
    %cst_29 = arith.constant 0.000000e+00 : f32
    %44 = vector.broadcast %cst_29 : f32 to vector<16x128xf32>
    %45 = arith.select %43, %35, %44 : vector<16x128xi1>, vector<16x128xf32>
    %cst_30 = arith.constant dense<0.000000e+00> : vector<128xf32>
    %46 = vector.multi_reduction <add>, %45, %cst_30 [0] : vector<16x128xf32> to vector<128xf32>
    %47 = vector.shape_cast %46 : vector<128xf32> to vector<1x128xf32>
    %c0_31 = arith.constant 0 : index
    %c0_32 = arith.constant 0 : index
    %48 = vector.load %arg10[%c0_31, %c0_32] : memref<1x128xf32, #tpu.memory_space<vmem>>, vector<1x128xf32>
    tpu.vector_store %arg10[%c0_31, %c0_32], %47 {strides = array<i32>} : memref<1x128xf32, #tpu.memory_space<vmem>>, vector<1x128xf32>,
    return
  }
  func.func @transform_0(%arg0: i32) -> i32 {
    %c0_i32 = arith.constant 0 : i32
    %c0_i32_0 = arith.constant 0 : i32
    return %c0_i32 : i32
  }
  func.func @transform_1(%arg0: i32) -> (i32, i32) {
    %c0_i32 = arith.constant 0 : i32
    %c0_i32_0 = arith.constant 0 : i32
    return %arg0, %c0_i32 : i32, i32
  }
  func.func @transform_2(%arg0: i32) -> (i32, i32) {
    %c0_i32 = arith.constant 0 : i32
    %c0_i32_0 = arith.constant 0 : i32
    %c0_i32_1 = arith.constant 0 : i32
    return %c0_i32, %c0_i32_0 : i32, i32
  }
  func.func @transform_3(%arg0: i32) -> (i32, i32) {
    %c0_i32 = arith.constant 0 : i32
    %c0_i32_0 = arith.constant 0 : i32
    %c0_i32_1 = arith.constant 0 : i32
    return %c0_i32, %c0_i32_0 : i32, i32
  }
  func.func @transform_4(%arg0: i32) -> (i32, i32) {
    %c0_i32 = arith.constant 0 : i32
    %c0_i32_0 = arith.constant 0 : i32
    %c0_i32_1 = arith.constant 0 : i32
    return %c0_i32, %c0_i32_0 : i32, i32
  }
  func.func @transform_5(%arg0: i32) -> (i32, i32) {
    %c0_i32 = arith.constant 0 : i32
    %c0_i32_0 = arith.constant 0 : i32
    %c0_i32_1 = arith.constant 0 : i32
    return %c0_i32, %c0_i32_0 : i32, i32
  }
  func.func @transform_6(%arg0: i32) -> (i32, i32) {
    %c0_i32 = arith.constant 0 : i32
    %c0_i32_0 = arith.constant 0 : i32
    %c0_i32_1 = arith.constant 0 : i32
    return %c0_i32, %c0_i32_0 : i32, i32
  }
  func.func @transform_7(%arg0: i32) -> (i32, i32) {
    %c0_i32 = arith.constant 0 : i32
    %c0_i32_0 = arith.constant 0 : i32
    %c0_i32_1 = arith.constant 0 : i32
    return %c0_i32, %c0_i32_0 : i32, i32
  }
  func.func @transform_8(%arg0: i32) -> (i32, i32) {
    %c0_i32 = arith.constant 0 : i32
    %c0_i32_0 = arith.constant 0 : i32
    return %arg0, %c0_i32 : i32, i32
  }
  func.func @transform_9(%arg0: i32) -> (i32, i32) {
    %c0_i32 = arith.constant 0 : i32
    %c0_i32_0 = arith.constant 0 : i32
    return %arg0, %c0_i32 : i32, i32
  }
}

</mosaic_0001>

<llo_original>
// kernel: adversary_forward.1
$region0: #{adversary_forward.1}
  #allocation0 [shape = 'u32[]', space=smem, size = 0x4, offset = 0x4, fixed_abs, tag = 'smem constant byte address 0x4 - core index']
  #allocation1 [shape = 'u32[144,128]{1,0:T(1,128)}', space=vmem, size = 0x12000, scoped, tag = 'internal scratch']
  #allocation2 [shape = 's32[1]{0:T(128)S(6)}', space=smem, size = 0x200, scoped, tag = 'scoped memory for adversary_forward.1']
  %s0 = inlined_call_operand.<no memory space> [shape: s32[1], index: 0, kind: input, shape index: {}]
  %s1 = inlined_call_operand.hbm [shape: bf16[16,128], index: 1, kind: input, shape index: {}]
  %s2 = inlined_call_operand.hbm [shape: bf16[128,128], index: 2, kind: input, shape index: {}]
  %s3 = inlined_call_operand.hbm [shape: f32[1,128], index: 3, kind: input, shape index: {}]
  %s4 = inlined_call_operand.hbm [shape: bf16[128,128], index: 4, kind: input, shape index: {}]
  %s5 = inlined_call_operand.hbm [shape: f32[1,128], index: 5, kind: input, shape index: {}]
  %s6 = inlined_call_operand.hbm [shape: bf16[128,128], index: 6, kind: input, shape index: {}]
  %s7 = inlined_call_operand.hbm [shape: f32[1,128], index: 7, kind: input, shape index: {}]
  %s8 = inlined_call_operand.hbm [shape: f32[16,128], index: 8, kind: output, shape index: {0}]
  %s9 = inlined_call_operand.hbm [shape: f32[1,128], index: 9, kind: output, shape index: {1}]
  %10 = xla_tuple %s8, %s9
  %s11 = sld [smem:[#allocation0]]
  $region78: #{adversary_forward.1} parent=0
    _
  %s13 = ssub.s32 1, %s11
  %s14 = scalar_select 0, %s13, %s11
  %15 = sst [smem:[#allocation2]] %s0
  $region1: #{adversary_forward.1} parent=0
    #allocation3 [shape = 'u8[4096]{0}', space=vmem, size = 0x1000, scoped, tag = 'input window, operand 1, single buffered']
    #allocation4 [shape = 's32[1]{0}', space=sflag, size = 0x4, scoped, tag = 'scoped memory for adversary_forward.1']
    #allocation5 [shape = 's32[1]{0}', space=sflag, size = 0x4, scoped, tag = 'scoped memory for adversary_forward.1']
    #allocation6 [shape = 'u8[32768]{0}', space=vmem, size = 0x8000, scoped, tag = 'input window, operand 2, single buffered']
    #allocation7 [shape = 's32[1]{0}', space=sflag, size = 0x4, scoped, tag = 'scoped memory for adversary_forward.1']
    #allocation8 [shape = 'u8[512]{0}', space=vmem, size = 0x400, scoped, tag = 'input window, operand 3, single buffered']
    #allocation9 [shape = 'u8[32768]{0}', space=vmem, size = 0x8000, scoped, tag = 'input window, operand 4, single buffered']
    #allocation10 [shape = 's32[1]{0}', space=sflag, size = 0x4, scoped, tag = 'scoped memory for adversary_forward.1']
    #allocation11 [shape = 'u8[512]{0}', space=vmem, size = 0x400, scoped, tag = 'input window, operand 5, single buffered']
    #allocation12 [shape = 'u8[32768]{0}', space=vmem, size = 0x8000, scoped, tag = 'input window, operand 6, single buffered']
    #allocation13 [shape = 's32[1]{0}', space=sflag, size = 0x4, scoped, tag = 'scoped memory for adversary_forward.1']
    #allocation14 [shape = 'u8[512]{0}', space=vmem, size = 0x400, scoped, tag = 'input window, operand 7, single buffered']
    #allocation15 [shape = 'u8[8192]{0}', space=vmem, size = 0x2000, scoped, tag = 'output window, operand 0, single buffered']
    #allocation16 [shape = 'u8[512]{0}', space=vmem, size = 0x400, scoped, tag = 'output window, operand 1, single buffered']
    #allocation17 [shape = 's32[1]{0}', space=sflag, size = 0x4, scoped, tag = 'scoped memory for adversary_forward.1']
    %16 = vsyncpa [#allocation4], 0
    %17 = vsyncpa [#allocation7], 0
    %18 = vsyncpa [#allocation10], 0
    %19 = vsyncpa [#allocation13], 0
    %20 = vsyncpa [#allocation5], 0
    %21 = vsyncpa [#allocation17], 0
    // Predicated region
    $region2: #{adversary_forward.1} parent=1 // pred_check
      _
    $region3: #{adversary_forward.1} parent=1 // pred_check_branch
      %23 = sbr.rel (0) target = $region5
    $region4: #{adversary_forward.1} parent=1 // pred_region
      _
    $region5: #{adversary_forward.1} parent=1 // pred_fallthru
      _
    // Predicated region
    $region6: #{adversary_forward.1} parent=1 // pred_check
      _
    $region7: #{adversary_forward.1} parent=1 // pred_check_branch
      %25 = sbr.rel (0) target = $region9
    $region8: #{adversary_forward.1} parent=1 // pred_region
      %s27 = ssub.s32 128, 128
      %28 = vsyncadd [#allocation4], %s27
      %s29 = sshll.u32 [#allocation3], 4
      %s30 = int_to_ptr.vmem [resolvable:$true] %s29
      %35 = dma.hbm_to_vmem [thread:$0]  %s1, 128, %s30, [#allocation4], 64, 64, 4
    $region9: #{adversary_forward.1} parent=1 // pred_fallthru
      _
    // Predicated region
    $region10: #{adversary_forward.1} parent=1 // pred_check
      _
    $region11: #{adversary_forward.1} parent=1 // pred_check_branch
      %37 = sbr.rel (0) target = $region13
    $region12: #{adversary_forward.1} parent=1 // pred_region
      %s39 = ssub.s32 1024, 1024
      %40 = vsyncadd [#allocation7], %s39
      %s41 = sshll.u32 [#allocation6], 4
      %s42 = int_to_ptr.vmem [resolvable:$true] %s41
      %47 = dma.hbm_to_vmem [thread:$0]  %s2, 1024, %s42, [#allocation7], 64, 64, 4
    $region13: #{adversary_forward.1} parent=1 // pred_fallthru
      _
    // Predicated region
    $region14: #{adversary_forward.1} parent=1 // pred_check
      _
    $region15: #{adversary_forward.1} parent=1 // pred_check_branch
      %49 = sbr.rel (0) target = $region17
    $region16: #{adversary_forward.1} parent=1 // pred_region
      %s51 = ssub.s32 16, 16
      %52 = vsyncadd [#allocation7], %s51
      %s54 = sshll.u32 [#allocation8], 4
      %s55 = int_to_ptr.vmem [resolvable:$true] %s54
      %57 = dma.hbm_to_vmem [thread:$0]  %s3, 16, %s55, [#allocation7]
    $region17: #{adversary_forward.1} parent=1 // pred_fallthru
      _
    // Predicated region
    $region18: #{adversary_forward.1} parent=1 // pred_check
      _
    $region19: #{adversary_forward.1} parent=1 // pred_check_branch
      %59 = sbr.rel (0) target = $region21
    $region20: #{adversary_forward.1} parent=1 // pred_region
      %s61 = ssub.s32 1024, 1024
      %62 = vsyncadd [#allocation10], %s61
      %s63 = sshll.u32 [#allocation9], 4
      %s64 = int_to_ptr.vmem [resolvable:$true] %s63
      %69 = dma.hbm_to_vmem [thread:$0]  %s4, 1024, %s64, [#allocation10], 64, 64, 4
    $region21: #{adversary_forward.1} parent=1 // pred_fallthru
      _
    // Predicated region
    $region22: #{adversary_forward.1} parent=1 // pred_check
      _
    $region23: #{adversary_forward.1} parent=1 // pred_check_branch
      %71 = sbr.rel (0) target = $region25
    $region24: #{adversary_forward.1} parent=1 // pred_region
      %s73 = ssub.s32 16, 16
      %74 = vsyncadd [#allocation10], %s73
      %s76 = sshll.u32 [#allocation11], 4
      %s77 = int_to_ptr.vmem [resolvable:$true] %s76
      %79 = dma.hbm_to_vmem [thread:$0]  %s5, 16, %s77, [#allocation10]
    $region25: #{adversary_forward.1} parent=1 // pred_fallthru
      _
    // Predicated region
    $region26: #{adversary_forward.1} parent=1 // pred_check
      _
    $region27: #{adversary_forward.1} parent=1 // pred_check_branch
      %81 = sbr.rel (0) target = $region29
    $region28: #{adversary_forward.1} parent=1 // pred_region
      %s83 = ssub.s32 1024, 1024
      %84 = vsyncadd [#allocation13], %s83
      %s85 = sshll.u32 [#allocation12], 4
      %s86 = int_to_ptr.vmem [resolvable:$true] %s85
      %91 = dma.hbm_to_vmem [thread:$0]  %s6, 1024, %s86, [#allocation13], 64, 64, 4
    $region29: #{adversary_forward.1} parent=1 // pred_fallthru
      _
    // Predicated region
    $region30: #{adversary_forward.1} parent=1 // pred_check
      _
    $region31: #{adversary_forward.1} parent=1 // pred_check_branch
      %93 = sbr.rel (0) target = $region33
    $region32: #{adversary_forward.1} parent=1 // pred_region
      %s95 = ssub.s32 16, 16
      %96 = vsyncadd [#allocation13], %s95
      %s98 = sshll.u32 [#allocation14], 4
      %s99 = int_to_ptr.vmem [resolvable:$true] %s98
      %101 = dma.hbm_to_vmem [thread:$0]  %s7, 16, %s99, [#allocation13]
    $region33: #{adversary_forward.1} parent=1 // pred_fallthru
      _
    // Predicated region
    $region34: #{adversary_forward.1} parent=1 // pred_check
      _
    $region35: #{adversary_forward.1} parent=1 // pred_check_branch
      %103 = sbr.rel (0) target = $region37
    $region36: #{adversary_forward.1} parent=1 // pred_region
      %104 = dma.done [#allocation4], 128
    $region37: #{adversary_forward.1} parent=1 // pred_fallthru
      _
    // Predicated region
    $region38: #{adversary_forward.1} parent=1 // pred_check
      _
    $region39: #{adversary_forward.1} parent=1 // pred_check_branch
      %106 = sbr.rel (0) target = $region41
    $region40: #{adversary_forward.1} parent=1 // pred_region
      %107 = dma.done [#allocation7], 1024
    $region41: #{adversary_forward.1} parent=1 // pred_fallthru
      _
    // Predicated region
    $region42: #{adversary_forward.1} parent=1 // pred_check
      _
    $region43: #{adversary_forward.1} parent=1 // pred_check_branch
      %109 = sbr.rel (0) target = $region45
    $region44: #{adversary_forward.1} parent=1 // pred_region
      %110 = dma.done [#allocation7], 16
    $region45: #{adversary_forward.1} parent=1 // pred_fallthru
      _
    // Predicated region
    $region46: #{adversary_forward.1} parent=1 // pred_check
      _
    $region47: #{adversary_forward.1} parent=1 // pred_check_branch
      %112 = sbr.rel (0) target = $region49
    $region48: #{adversary_forward.1} parent=1 // pred_region
      %113 = dma.done [#allocation10], 1024
    $region49: #{adversary_forward.1} parent=1 // pred_fallthru
      _
    // Predicated region
    $region50: #{adversary_forward.1} parent=1 // pred_check
      _
    $region51: #{adversary_forward.1} parent=1 // pred_check_branch
      %115 = sbr.rel (0) target = $region53
    $region52: #{adversary_forward.1} parent=1 // pred_region
      %116 = dma.done [#allocation10], 16
    $region53: #{adversary_forward.1} parent=1 // pred_fallthru
      _
    // Predicated region
    $region54: #{adversary_forward.1} parent=1 // pred_check
      _
    $region55: #{adversary_forward.1} parent=1 // pred_check_branch
      %118 = sbr.rel (0) target = $region57
    $region56: #{adversary_forward.1} parent=1 // pred_region
      %119 = dma.done [#allocation13], 1024
    $region57: #{adversary_forward.1} parent=1 // pred_fallthru
      _
    // Predicated region
    $region58: #{adversary_forward.1} parent=1 // pred_check
      _
    $region59: #{adversary_forward.1} parent=1 // pred_check_branch
      %121 = sbr.rel (0) target = $region61
    $region60: #{adversary_forward.1} parent=1 // pred_region
      %122 = dma.done [#allocation13], 16
    $region61: #{adversary_forward.1} parent=1 // pred_fallthru
      _
    %v124 = vld [vmem:[#allocation3] sm:$0xf]
    %v125 = vld [vmem:[#allocation3 + $0x4] sm:$0xf]
    %v126 = vunpack.c.l.bf16 %v124
    %v127 = vunpack.c.l.bf16 %v125
    %v128 = vld [vmem:[#allocation6] sm:$0xf]
    %v129 = vld [vmem:[#allocation6 + $0x4] sm:$0xf]
    %v130 = vld [vmem:[#allocation6 + $0x8] sm:$0xf]
    %v131 = vld [vmem:[#allocation6 + $0xc] sm:$0xf]
    %v132 = vld [vmem:[#allocation6 + $0x10] sm:$0xf]
    %v133 = vld [vmem:[#allocation6 + $0x14] sm:$0xf]
    %v134 = vld [vmem:[#allocation6 + $0x18] sm:$0xf]
    %v135 = vld [vmem:[#allocation6 + $0x1c] sm:$0xf]
    %v136 = vld [vmem:[#allocation6 + $0x20] sm:$0xf]
    %v137 = vld [vmem:[#allocation6 + $0x24] sm:$0xf]
    %v138 = vld [vmem:[#allocation6 + $0x28] sm:$0xf]
    %v139 = vld [vmem:[#allocation6 + $0x2c] sm:$0xf]
    %v140 = vld [vmem:[#allocation6 + $0x30] sm:$0xf]
    %v141 = vld [vmem:[#allocation6 + $0x34] sm:$0xf]
    %v142 = vld [vmem:[#allocation6 + $0x38] sm:$0xf]
    %v143 = vld [vmem:[#allocation6 + $0x3c] sm:$0xf]
    %v144 = vld [vmem:[#allocation8] sm:$0x1]
    %v146 = vlaneseq
    %v147 = vshrl.u32 %v146, 7
    %v148 = vsub.s32 0, %v147
    %v149 = vrot.slane %v144, %v148
    %v153 = vunpack.c.l.b16 %v124
    %v154 = vunpack.c.l.b16 %v125
    %v155 = vpack.c.b16 %v154, %v153
    %v173 = vunpack.c.l.b16 %v128
    %v174 = vunpack.c.l.b16 %v129
    %v175 = vunpack.c.l.b16 %v130
    %v176 = vunpack.c.l.b16 %v131
    %v177 = vunpack.c.l.b16 %v132
    %v178 = vunpack.c.l.b16 %v133
    %v179 = vunpack.c.l.b16 %v134
    %v180 = vunpack.c.l.b16 %v135
    %v181 = vunpack.c.l.b16 %v136
    %v182 = vunpack.c.l.b16 %v137
    %v183 = vunpack.c.l.b16 %v138
    %v184 = vunpack.c.l.b16 %v139
    %v185 = vunpack.c.l.b16 %v140
    %v186 = vunpack.c.l.b16 %v141
    %v187 = vunpack.c.l.b16 %v142
    %v188 = vunpack.c.l.b16 %v143
    %v189 = vpack.c.b16 %v174, %v173
    %v190 = vpack.c.b16 %v176, %v175
    %v191 = vpack.c.b16 %v178, %v177
    %v192 = vpack.c.b16 %v180, %v179
    %v193 = vpack.c.b16 %v182, %v181
    %v194 = vpack.c.b16 %v184, %v183
    %v195 = vpack.c.b16 %v186, %v185
    %v196 = vpack.c.b16 %v188, %v187
    %205 = vmatprep.subr.bf16.mxu0 0
    %206 = vmatpush1.bf16.msra.mxu0 %v189
    %207 = vmatprep.subr.bf16.mxu0 0
    %208 = vmatpush1.bf16.msra.mxu0 %v190
    %209 = vmatprep.subr.bf16.mxu0 0
    %210 = vmatpush1.bf16.msra.mxu0 %v191
    %211 = vmatprep.subr.bf16.mxu0 0
    %212 = vmatpush1.bf16.msra.mxu0 %v192
    %213 = vmatprep.subr.bf16.mxu0 0
    %214 = vmatpush1.bf16.msra.mxu0 %v193
    %215 = vmatprep.subr.bf16.mxu0 0
    %216 = vmatpush1.bf16.msra.mxu0 %v194
    %217 = vmatprep.subr.bf16.mxu0 0
    %218 = vmatpush1.bf16.msra.mxu0 %v195
    %219 = vmatprep.subr.bf16.mxu0 0
    %220 = vmatpush1.bf16.msra.mxu0 %v196
    %221 = vmatprep.subr.bf16.mxu0 0
    %222 = vmatpush1.bf16.msra.mxu0 0
    %223 = vmatprep.subr.bf16.mxu0 0
    %224 = vmatpush1.bf16.msra.mxu0 0
    %225 = vmatprep.subr.bf16.mxu0 0
    %226 = vmatpush1.bf16.msra.mxu0 0
    %227 = vmatprep.subr.bf16.mxu0 0
    %228 = vmatpush1.bf16.msra.mxu0 0
    %229 = vmatprep.subr.bf16.mxu0 0
    %230 = vmatpush1.bf16.msra.mxu0 0
    %231 = vmatprep.subr.bf16.mxu0 0
    %232 = vmatpush1.bf16.msra.mxu0 0
    %233 = vmatprep.subr.bf16.mxu0 0
    %234 = vmatpush1.bf16.msra.mxu0 0
    %235 = vmatprep.subr.bf16.mxu0 0
    %236 = vmatpush1.bf16.msra.mxu0 0
    %237 = vmatprep.mubr.bf16.mxu0 0
    %238 = vmatmul.mubr.bf16.gmra.mrb[0].mxu0 %v155
    %v239 = vpop.f32.mrb[0].mxu0
    %v240 = vadd.f32 %v149, %v239
    %v241 = vpop.f32.mrb[0].mxu0
    %v242 = vpop.f32.mrb[0].mxu0
    %v243 = vadd.f32 %v149, %v242
    %v244 = vpop.f32.mrb[0].mxu0
    %245 = vdwg.mxu0
    %v246 = vadd.f32 %v240, %v126
    %v247 = vadd.f32 %v243, %v127
    %v248 = vpack.c.bf16 %v247, %v246
    %249 = vmatprep.subr.bf16.mxu0 0
    %250 = vmatpush1.bf16.msra.mxu0 %v189
    %251 = vmatprep.subr.bf16.mxu0 0
    %252 = vmatpush1.bf16.msra.mxu0 %v190
    %253 = vmatprep.subr.bf16.mxu0 0
    %254 = vmatpush1.bf16.msra.mxu0 %v191
    %255 = vmatprep.subr.bf16.mxu0 0
    %256 = vmatpush1.bf16.msra.mxu0 %v192
    %257 = vmatprep.subr.bf16.mxu0 0
    %258 = vmatpush1.bf16.msra.mxu0 %v193
    %259 = vmatprep.subr.bf16.mxu0 0
    %260 = vmatpush1.bf16.msra.mxu0 %v194
    %261 = vmatprep.subr.bf16.mxu0 0
    %262 = vmatpush1.bf16.msra.mxu0 %v195
    %263 = vmatprep.subr.bf16.mxu0 0
    %264 = vmatpush1.bf16.msra.mxu0 %v196
    %265 = vmatprep.subr.bf16.mxu0 0
    %266 = vmatpush1.bf16.msra.mxu0 0
    %267 = vmatprep.subr.bf16.mxu0 0
    %268 = vmatpush1.bf16.msra.mxu0 0
    %269 = vmatprep.subr.bf16.mxu0 0
    %270 = vmatpush1.bf16.msra.mxu0 0
    %271 = vmatprep.subr.bf16.mxu0 0
    %272 = vmatpush1.bf16.msra.mxu0 0
    %273 = vmatprep.subr.bf16.mxu0 0
    %274 = vmatpush1.bf16.msra.mxu0 0
    %275 = vmatprep.subr.bf16.mxu0 0
    %276 = vmatpush1.bf16.msra.mxu0 0
    %277 = vmatprep.subr.bf16.mxu0 0
    %278 = vmatpush1.bf16.msra.mxu0 0
    %279 = vmatprep.subr.bf16.mxu0 0
    %280 = vmatpush1.bf16.msra.mxu0 0
    %281 = vmatprep.mubr.bf16.mxu0 0
    %282 = vmatmul.mubr.bf16.gmra.mrb[0].mxu0 %v248
    %v283 = vpop.f32.mrb[0].mxu0
    %v284 = vadd.f32 %v149, %v283
    %v285 = vpop.f32.mrb[0].mxu0
    %v286 = vpop.f32.mrb[0].mxu0
    %v287 = vadd.f32 %v149, %v286
    %v288 = vpop.f32.mrb[0].mxu0
    %289 = vdwg.mxu0
    %v290 = vpack.c.bf16 %v287, %v284
    %v291 = vld [vmem:[#allocation9] sm:$0xf]
    %v292 = vld [vmem:[#allocation9 + $0x4] sm:$0xf]
    %v293 = vld [vmem:[#allocation9 + $0x8] sm:$0xf]
    %v294 = vld [vmem:[#allocation9 + $0xc] sm:$0xf]
    %v295 = vld [vmem:[#allocation9 + $0x10] sm:$0xf]
    %v296 = vld [vmem:[#allocation9 + $0x14] sm:$0xf]
    %v297 = vld [vmem:[#allocation9 + $0x18] sm:$0xf]
    %v298 = vld [vmem:[#allocation9 + $0x1c] sm:$0xf]
    %v299 = vld [vmem:[#allocation9 + $0x20] sm:$0xf]
    %v300 = vld [vmem:[#allocation9 + $0x24] sm:$0xf]
    %v301 = vld [vmem:[#allocation9 + $0x28] sm:$0xf]
    %v302 = vld [vmem:[#allocation9 + $0x2c] sm:$0xf]
    %v303 = vld [vmem:[#allocation9 + $0x30] sm:$0xf]
    %v304 = vld [vmem:[#allocation9 + $0x34] sm:$0xf]
    %v305 = vld [vmem:[#allocation9 + $0x38] sm:$0xf]
    %v306 = vld [vmem:[#allocation9 + $0x3c] sm:$0xf]
    %v307 = vld [vmem:[#allocation11] sm:$0x1]
    %v309 = vlaneseq
    %v310 = vshrl.u32 %v309, 7
    %v311 = vsub.s32 0, %v310
    %v312 = vrot.slane %v307, %v311
    %v330 = vunpack.c.l.b16 %v291
    %v331 = vunpack.c.l.b16 %v292
    %v332 = vunpack.c.l.b16 %v293
    %v333 = vunpack.c.l.b16 %v294
    %v334 = vunpack.c.l.b16 %v295
    %v335 = vunpack.c.l.b16 %v296
    %v336 = vunpack.c.l.b16 %v297
    %v337 = vunpack.c.l.b16 %v298
    %v338 = vunpack.c.l.b16 %v299
    %v339 = vunpack.c.l.b16 %v300
    %v340 = vunpack.c.l.b16 %v301
    %v341 = vunpack.c.l.b16 %v302
    %v342 = vunpack.c.l.b16 %v303
    %v343 = vunpack.c.l.b16 %v304
    %v344 = vunpack.c.l.b16 %v305
    %v345 = vunpack.c.l.b16 %v306
    %v346 = vpack.c.b16 %v331, %v330
    %v347 = vpack.c.b16 %v333, %v332
    %v348 = vpack.c.b16 %v335, %v334
    %v349 = vpack.c.b16 %v337, %v336
    %v350 = vpack.c.b16 %v339, %v338
    %v351 = vpack.c.b16 %v341, %v340
    %v352 = vpack.c.b16 %v343, %v342
    %v353 = vpack.c.b16 %v345, %v344
    %362 = vmatprep.subr.bf16.mxu0 0
    %363 = vmatpush1.bf16.msra.mxu0 %v346
    %364 = vmatprep.subr.bf16.mxu0 0
    %365 = vmatpush1.bf16.msra.mxu0 %v347
    %366 = vmatprep.subr.bf16.mxu0 0
    %367 = vmatpush1.bf16.msra.mxu0 %v348
    %368 = vmatprep.subr.bf16.mxu0 0
    %369 = vmatpush1.bf16.msra.mxu0 %v349
    %370 = vmatprep.subr.bf16.mxu0 0
    %371 = vmatpush1.bf16.msra.mxu0 %v350
    %372 = vmatprep.subr.bf16.mxu0 0
    %373 = vmatpush1.bf16.msra.mxu0 %v351
    %374 = vmatprep.subr.bf16.mxu0 0
    %375 = vmatpush1.bf16.msra.mxu0 %v352
    %376 = vmatprep.subr.bf16.mxu0 0
    %377 = vmatpush1.bf16.msra.mxu0 %v353
    %378 = vmatprep.subr.bf16.mxu0 0
    %379 = vmatpush1.bf16.msra.mxu0 0
    %380 = vmatprep.subr.bf16.mxu0 0
    %381 = vmatpush1.bf16.msra.mxu0 0
    %382 = vmatprep.subr.bf16.mxu0 0
    %383 = vmatpush1.bf16.msra.mxu0 0
    %384 = vmatprep.subr.bf16.mxu0 0
    %385 = vmatpush1.bf16.msra.mxu0 0
    %386 = vmatprep.subr.bf16.mxu0 0
    %387 = vmatpush1.bf16.msra.mxu0 0
    %388 = vmatprep.subr.bf16.mxu0 0
    %389 = vmatpush1.bf16.msra.mxu0 0
    %390 = vmatprep.subr.bf16.mxu0 0
    %391 = vmatpush1.bf16.msra.mxu0 0
    %392 = vmatprep.subr.bf16.mxu0 0
    %393 = vmatpush1.bf16.msra.mxu0 0
    %394 = vmatprep.mubr.bf16.mxu0 0
    %395 = vmatmul.mubr.bf16.gmra.mrb[0].mxu0 %v290
    %v396 = vpop.f32.mrb[0].mxu0
    %v397 = vadd.f32 %v312, %v396
    %v398 = vpop.f32.mrb[0].mxu0
    %v399 = vpop.f32.mrb[0].mxu0
    %v400 = vadd.f32 %v312, %v399
    %v401 = vpop.f32.mrb[0].mxu0
    %402 = vdwg.mxu0
    %v403 = vadd.f32 %v397, %v284
    %v404 = vadd.f32 %v400, %v287
    %v405 = vpack.c.bf16 %v404, %v403
    %406 = vmatprep.subr.bf16.mxu0 0
    %407 = vmatpush1.bf16.msra.mxu0 %v189
    %408 = vmatprep.subr.bf16.mxu0 0
    %409 = vmatpush1.bf16.msra.mxu0 %v190
    %410 = vmatprep.subr.bf16.mxu0 0
    %411 = vmatpush1.bf16.msra.mxu0 %v191
    %412 = vmatprep.subr.bf16.mxu0 0
    %413 = vmatpush1.bf16.msra.mxu0 %v192
    %414 = vmatprep.subr.bf16.mxu0 0
    %415 = vmatpush1.bf16.msra.mxu0 %v193
    %416 = vmatprep.subr.bf16.mxu0 0
    %417 = vmatpush1.bf16.msra.mxu0 %v194
    %418 = vmatprep.subr.bf16.mxu0 0
    %419 = vmatpush1.bf16.msra.mxu0 %v195
    %420 = vmatprep.subr.bf16.mxu0 0
    %421 = vmatpush1.bf16.msra.mxu0 %v196
    %422 = vmatprep.subr.bf16.mxu0 0
    %423 = vmatpush1.bf16.msra.mxu0 0
    %424 = vmatprep.subr.bf16.mxu0 0
    %425 = vmatpush1.bf16.msra.mxu0 0
    %426 = vmatprep.subr.bf16.mxu0 0
    %427 = vmatpush1.bf16.msra.mxu0 0
    %428 = vmatprep.subr.bf16.mxu0 0
    %429 = vmatpush1.bf16.msra.mxu0 0
    %430 = vmatprep.subr.bf16.mxu0 0
    %431 = vmatpush1.bf16.msra.mxu0 0
    %432 = vmatprep.subr.bf16.mxu0 0
    %433 = vmatpush1.bf16.msra.mxu0 0
    %434 = vmatprep.subr.bf16.mxu0 0
    %435 = vmatpush1.bf16.msra.mxu0 0
    %436 = vmatprep.subr.bf16.mxu0 0
    %437 = vmatpush1.bf16.msra.mxu0 0
    %438 = vmatprep.mubr.bf16.mxu0 0
    %439 = vmatmul.mubr.bf16.gmra.mrb[0].mxu0 %v405
    %v440 = vpop.f32.mrb[0].mxu0
    %v441 = vadd.f32 %v149, %v440
    %v442 = vpop.f32.mrb[0].mxu0
    %v443 = vpop.f32.mrb[0].mxu0
    %v444 = vadd.f32 %v149, %v443
    %v445 = vpop.f32.mrb[0].mxu0
    %446 = vdwg.mxu0
    %v447 = vpack.c.bf16 %v444, %v441
    %v448 = vld [vmem:[#allocation12] sm:$0xf]
    %v449 = vld [vmem:[#allocation12 + $0x4] sm:$0xf]
    %v450 = vld [vmem:[#allocation12 + $0x8] sm:$0xf]
    %v451 = vld [vmem:[#allocation12 + $0xc] sm:$0xf]
    %v452 = vld [vmem:[#allocation12 + $0x10] sm:$0xf]
    %v453 = vld [vmem:[#allocation12 + $0x14] sm:$0xf]
    %v454 = vld [vmem:[#allocation12 + $0x18] sm:$0xf]
    %v455 = vld [vmem:[#allocation12 + $0x1c] sm:$0xf]
    %v456 = vld [vmem:[#allocation12 + $0x20] sm:$0xf]
    %v457 = vld [vmem:[#allocation12 + $0x24] sm:$0xf]
    %v458 = vld [vmem:[#allocation12 + $0x28] sm:$0xf]
    %v459 = vld [vmem:[#allocation12 + $0x2c] sm:$0xf]
    %v460 = vld [vmem:[#allocation12 + $0x30] sm:$0xf]
    %v461 = vld [vmem:[#allocation12 + $0x34] sm:$0xf]
    %v462 = vld [vmem:[#allocation12 + $0x38] sm:$0xf]
    %v463 = vld [vmem:[#allocation12 + $0x3c] sm:$0xf]
    %v464 = vld [vmem:[#allocation14] sm:$0x1]
    %v466 = vlaneseq
    %v467 = vshrl.u32 %v466, 7
    %v468 = vsub.s32 0, %v467
    %v469 = vrot.slane %v464, %v468
    %v487 = vunpack.c.l.b16 %v448
    %v488 = vunpack.c.l.b16 %v449
    %v489 = vunpack.c.l.b16 %v450
    %v490 = vunpack.c.l.b16 %v451
    %v491 = vunpack.c.l.b16 %v452
    %v492 = vunpack.c.l.b16 %v453
    %v493 = vunpack.c.l.b16 %v454
    %v494 = vunpack.c.l.b16 %v455
    %v495 = vunpack.c.l.b16 %v456
    %v496 = vunpack.c.l.b16 %v457
    %v497 = vunpack.c.l.b16 %v458
    %v498 = vunpack.c.l.b16 %v459
    %v499 = vunpack.c.l.b16 %v460
    %v500 = vunpack.c.l.b16 %v461
    %v501 = vunpack.c.l.b16 %v462
    %v502 = vunpack.c.l.b16 %v463
    %v503 = vpack.c.b16 %v488, %v487
    %v504 = vpack.c.b16 %v490, %v489
    %v505 = vpack.c.b16 %v492, %v491
    %v506 = vpack.c.b16 %v494, %v493
    %v507 = vpack.c.b16 %v496, %v495
    %v508 = vpack.c.b16 %v498, %v497
    %v509 = vpack.c.b16 %v500, %v499
    %v510 = vpack.c.b16 %v502, %v501
    %519 = vmatprep.subr.bf16.mxu0 0
    %520 = vmatpush1.bf16.msra.mxu0 %v503
    %521 = vmatprep.subr.bf16.mxu0 0
    %522 = vmatpush1.bf16.msra.mxu0 %v504
    %523 = vmatprep.subr.bf16.mxu0 0
    %524 = vmatpush1.bf16.msra.mxu0 %v505
    %525 = vmatprep.subr.bf16.mxu0 0
    %526 = vmatpush1.bf16.msra.mxu0 %v506
    %527 = vmatprep.subr.bf16.mxu0 0
    %528 = vmatpush1.bf16.msra.mxu0 %v507
    %529 = vmatprep.subr.bf16.mxu0 0
    %530 = vmatpush1.bf16.msra.mxu0 %v508
    %531 = vmatprep.subr.bf16.mxu0 0
    %532 = vmatpush1.bf16.msra.mxu0 %v509
    %533 = vmatprep.subr.bf16.mxu0 0
    %534 = vmatpush1.bf16.msra.mxu0 %v510
    %535 = vmatprep.subr.bf16.mxu0 0
    %536 = vmatpush1.bf16.msra.mxu0 0
    %537 = vmatprep.subr.bf16.mxu0 0
    %538 = vmatpush1.bf16.msra.mxu0 0
    %539 = vmatprep.subr.bf16.mxu0 0
    %540 = vmatpush1.bf16.msra.mxu0 0
    %541 = vmatprep.subr.bf16.mxu0 0
    %542 = vmatpush1.bf16.msra.mxu0 0
    %543 = vmatprep.subr.bf16.mxu0 0
    %544 = vmatpush1.bf16.msra.mxu0 0
    %545 = vmatprep.subr.bf16.mxu0 0
    %546 = vmatpush1.bf16.msra.mxu0 0
    %547 = vmatprep.subr.bf16.mxu0 0
    %548 = vmatpush1.bf16.msra.mxu0 0
    %549 = vmatprep.subr.bf16.mxu0 0
    %550 = vmatpush1.bf16.msra.mxu0 0
    %551 = vmatprep.mubr.bf16.mxu0 0
    %552 = vmatmul.mubr.bf16.gmra.mrb[0].mxu0 %v447
    %v553 = vpop.f32.mrb[0].mxu0
    %v554 = vadd.f32 %v469, %v553
    %v555 = vpop.f32.mrb[0].mxu0
    %v556 = vpop.f32.mrb[0].mxu0
    %v557 = vadd.f32 %v469, %v556
    %v558 = vpop.f32.mrb[0].mxu0
    %559 = vdwg.mxu0
    %v560 = vmax.f32 %v554, 0.0
    %v561 = vmax.f32 %v557, 0.0
    %562 = vst [vmem:[#allocation15] sm:$0xff] %v560
    %563 = vst [vmem:[#allocation15 + $0x8] sm:$0xff] %v561
    %s564 = smul.u32 0, 16
    %v565 = vlaneseq
    %v566 = vshrl.u32 %v565, 7
    %v567 = vadd.s32 %v566, 8
    %v568 = vstv %s564
    %v569 = vadd.s32 %v566, %v568
    %v570 = vadd.s32 %v567, %v568
    %s571 = sld [smem:[#allocation2]]
    %v572 = vstv %s571
    %vm573 = vcmp.lt.s32.totalorder %v569, %v572
    %vm574 = vcmp.lt.s32.totalorder %v570, %v572
    %v575 = vsel %vm573, %v560, 0.0
    %v576 = vsel %vm574, %v561, 0.0
    %v577 = vadd.f32 %v575, %v576
    %v578 = vrot.slane %v577, 4
    %v579 = vadd.f32 %v577, %v578
    %v580 = vrot.slane %v579, 2
    %v581 = vadd.f32 %v579, %v580
    %v582 = vrot.slane %v581, 1
    %v583 = vadd.f32 %v581, %v582
    %584 = vst [vmem:[#allocation16] sm:$0x1] %v583
    // Predicated region
    $region62: #{adversary_forward.1} parent=1 // pred_check
      _
    $region63: #{adversary_forward.1} parent=1 // pred_check_branch
      %586 = sbr.rel (0) target = $region65
    $region64: #{adversary_forward.1} parent=1 // pred_region
      %s588 = ssub.s32 256, 256
      %589 = vsyncadd [#allocation5], %s588
      %s590 = sshll.u32 [#allocation15], 4
      %s591 = int_to_ptr.vmem [resolvable:$true] %s590
      %596 = dma.vmem_to_hbm [thread:$0]  %s591, 256, %s8, [#allocation5], 128, 128, 8
    $region65: #{adversary_forward.1} parent=1 // pred_fallthru
      _
    // Predicated region
    $region66: #{adversary_forward.1} parent=1 // pred_check
      _
    $region67: #{adversary_forward.1} parent=1 // pred_check_branch
      %598 = sbr.rel (0) target = $region69
    $region68: #{adversary_forward.1} parent=1 // pred_region
      %s600 = ssub.s32 16, 16
      %601 = vsyncadd [#allocation17], %s600
      %s603 = sshll.u32 [#allocation16], 4
      %s604 = int_to_ptr.vmem [resolvable:$true] %s603
      %606 = dma.vmem_to_hbm [thread:$0]  %s604, 16, %s9, [#allocation17]
    $region69: #{adversary_forward.1} parent=1 // pred_fallthru
      _
    // Predicated region
    $region70: #{adversary_forward.1} parent=1 // pred_check
      _
    $region71: #{adversary_forward.1} parent=1 // pred_check_branch
      %608 = sbr.rel (0) target = $region73
    $region72: #{adversary_forward.1} parent=1 // pred_region
      %609 = dma.done [#allocation5], 256
    $region73: #{adversary_forward.1} parent=1 // pred_fallthru
      _
    // Predicated region
    $region74: #{adversary_forward.1} parent=1 // pred_check
      _
    $region75: #{adversary_forward.1} parent=1 // pred_check_branch
      %611 = sbr.rel (0) target = $region77
    $region76: #{adversary_forward.1} parent=1 // pred_region
      %612 = dma.done [#allocation17], 16
    $region77: #{adversary_forward.1} parent=1 // pred_fallthru
      _
    %613 = vsyncpa [#allocation4], 1
    %614 = vsyncpa [#allocation7], 1
    %615 = vsyncpa [#allocation10], 1
    %616 = vsyncpa [#allocation13], 1
    %617 = vsyncpa [#allocation5], 1
    %618 = vsyncpa [#allocation17], 1

</llo_original>
